<compile_context>
chip_gen: v7x
topology: tpu7x:2x2x1
jax: 0.10.0
libtpu: 0.0.40
codegen_flags: <defaults>
</compile_context>

<pallas_src>
import jax
import jax.numpy as jnp
from jax.experimental import pallas as pl
from jax.experimental.pallas import tpu as pltpu


def _round_up(x, m):
    return ((x + m - 1) // m) * m


def _fused_linear_kernel(p_ref, w_ref, b_ref, out_ref):
    # p_ref  : (TN, C)      pooled activations
    # w_ref  : (C, K_pad)   fused [cls | box] weights (resident across grid)
    # b_ref  : (1, K_pad)   fused biases (zero in padded columns)
    # out_ref: (TN, K_pad)  lane-dense fused output
    acc = jnp.dot(p_ref[...], w_ref[...], preferred_element_type=jnp.float32)
    out_ref[...] = (acc + b_ref[...]).astype(out_ref.dtype)


def fast_rcnn_predictor(x_nchw, cls_w, cls_b, box_w, box_b, *,
                        tile_n=None, compute_dtype=jnp.float32):
    """FastRCNNPredictor forward.

    x_nchw : (N, C, H, W)
    cls_w  : (num_classes, C)   PyTorch nn.Linear layout
    cls_b  : (num_classes,)
    box_w  : (num_bbox_out, C)
    box_b  : (num_bbox_out,)
    Returns (cls_logit (N, num_classes), bbox_pred (N, num_bbox_out)).

    compute_dtype: dtype of the GEMM operands.  Default f32 matches the
    PyTorch module exactly; bf16 is allowed but is a documented precision
    downgrade (the GEMM is tiny, so there is no perf reason to use it).
    """
    N, C, H, W = x_nchw.shape
    num_classes = cls_w.shape[0]
    num_box = box_w.shape[0]
    K = num_classes + num_box
    K_pad = max(128, _round_up(K, 128))          # lane-dense fused output width
    in_bpe = jnp.dtype(compute_dtype).itemsize

    # ---- AdaptiveAvgPool2d(1): XLA reduction on the native NCHW layout ----
    # (H, W) are the trailing contiguous axes, so this is a single 4 B/elem
    # streaming read of x with no relayout / extra HBM pass.
    # TODO(synk): a backbone that emits channels-last bf16 could instead feed
    # a fully fused pool+GEMM Pallas kernel directly.
    pooled = jnp.mean(x_nchw.astype(jnp.float32), axis=(2, 3))       # (N, C) f32
    pooled = pooled.astype(compute_dtype)

    # ---- fused [cls | box] weights / bias, zero-padded to K_pad columns ----
    fused_w = jnp.concatenate([cls_w.T, box_w.T], axis=1).astype(jnp.float32)
    fused_w = jnp.pad(fused_w, ((0, 0), (0, K_pad - K))).astype(compute_dtype)   # (C, K_pad)
    fused_b = jnp.concatenate([cls_b, box_b]).astype(jnp.float32)
    fused_b = jnp.pad(fused_b, (0, K_pad - K)).reshape(1, K_pad)                 # (1, K_pad)

    # ---- derive tile_n from a per-generation VMEM budget ----
    if tile_n is None:
        try:
            vmem_cap = pltpu.get_tpu_info().vmem_capacity_bytes
        except Exception:
            vmem_cap = 64 * 1024 * 1024                  # conservative: v7x per-TC VMEM
        budget = vmem_cap // 4                           # <=25% of physical VMEM: ample headroom
        resident = 2 * C * K_pad * in_bpe + 2 * 8 * K_pad * 4          # weights + bias buffers
        per_row = 2 * (_round_up(C, 128) * in_bpe + K_pad * 4)         # pooled + out, double-buffered
        tile_n = (budget - resident) // max(per_row, 1)
        tile_n = int(max(8, min(512, tile_n)) // 8 * 8)

    if N <= tile_n:
        tn = N                                           # single block == full array extent
    else:
        # keep >= 2 grid steps so ("parallel",) can split RoI tiles across
        # TensorCores and the pipeline overlaps DMA with compute.
        tn = min(max(8, (tile_n // 8) * 8), _round_up(pl.cdiv(N, 2), 8))
    grid = (pl.cdiv(N, tn),)

    # ---- VMEM limit derived from the actual (padded) footprint + headroom ----
    footprint = (2 * C * K_pad * in_bpe + 2 * 8 * K_pad * 4
                 + 2 * _round_up(tn, 8) * _round_up(C, 128) * in_bpe
                 + 2 * _round_up(tn, 8) * K_pad * 4)
    vmem_limit = int(min(max(2 * footprint, 16 * 1024 * 1024), 48 * 1024 * 1024))

    cost = pl.CostEstimate(
        flops=int(2 * N * C * K_pad),
        transcendentals=0,
        bytes_accessed=int(pooled.size * in_bpe + fused_w.size * in_bpe
                           + fused_b.size * 4 + N * K_pad * 4),
    )

    out = pl.pallas_call(
        _fused_linear_kernel,
        out_shape=jax.ShapeDtypeStruct((N, K_pad), jnp.float32),
        grid_spec=pltpu.PrefetchScalarGridSpec(
            num_scalar_prefetch=0,
            grid=grid,
            in_specs=[
                pl.BlockSpec((tn, C), lambda i: (i, 0)),        # pooled activations tile
                pl.BlockSpec((C, K_pad), lambda i: (0, 0)),     # fused weights (constant block)
                pl.BlockSpec((1, K_pad), lambda i: (0, 0)),     # fused bias (constant block)
            ],
            out_specs=pl.BlockSpec((tn, K_pad), lambda i: (i, 0)),
        ),
        compiler_params=pltpu.CompilerParams(
            dimension_semantics=("parallel",),       # shard RoI tiles over TCs (v7x)
            vmem_limit_bytes=vmem_limit,
        ),
        cost_estimate=cost,
    )(pooled, fused_w, fused_b)

    cls_logit = out[:, :num_classes]
    bbox_pred = out[:, num_classes:K]
    return cls_logit, bbox_pred


if __name__ == "__main__":
    # Small synthetic config: in_channels=4, NUM_CLASSES=8, CLS_AGNOSTIC_BBOX_REG=False
    N, C, H, W = 2, 4, 16, 16
    num_classes = 8
    num_bbox_reg_classes = num_classes            # not class-agnostic
    num_box = num_bbox_reg_classes * 4

    key = jax.random.PRNGKey(0)
    kx, kcw, kbw = jax.random.split(key, 3)

    x = jax.random.normal(kx, (N, C, H, W), dtype=jnp.float32)

    # Deterministic init mirroring the module's __init__:
    #   cls_score.weight ~ N(0, 0.01), bias = 0
    #   bbox_pred.weight ~ N(0, 0.001), bias = 0
    cls_w = 0.01 * jax.random.normal(kcw, (num_classes, C), dtype=jnp.float32)
    cls_b = jnp.zeros((num_classes,), dtype=jnp.float32)
    box_w = 0.001 * jax.random.normal(kbw, (num_box, C), dtype=jnp.float32)
    box_b = jnp.zeros((num_box,), dtype=jnp.float32)

    cls_logit, bbox_pred = fast_rcnn_predictor(x, cls_w, cls_b, box_w, box_b)
    jax.block_until_ready((cls_logit, bbox_pred))

    assert cls_logit.shape == (N, num_classes)
    assert bbox_pred.shape == (N, num_box)

    # Exact f32 reference (the PyTorch module's semantics).
    pooled_ref = jnp.mean(x, axis=(2, 3))
    cls_ref = pooled_ref @ cls_w.T + cls_b
    box_ref = pooled_ref @ box_w.T + box_b
    assert jnp.allclose(cls_logit, cls_ref, atol=1e-4, rtol=1e-3), \
        float(jnp.max(jnp.abs(cls_logit - cls_ref)))
    assert jnp.allclose(bbox_pred, box_ref, atol=1e-4, rtol=1e-3), \
        float(jnp.max(jnp.abs(bbox_pred - box_ref)))

    print("KERNEL_OK")
</pallas_src>

<mosaic_0001>
module attributes {stable_mosaic.version = 11 : i64} {
  func.func @_fused_linear_kernel(%arg0: i32, %arg1: memref<2x4xf32, #tpu.memory_space<vmem>>, %arg2: memref<4x128xf32, #tpu.memory_space<vmem>>, %arg3: memref<1x128xf32, #tpu.memory_space<vmem>>, %arg4: memref<2x128xf32, #tpu.memory_space<vmem>>) attributes {dimension_semantics = [#tpu.dimension_semantics<parallel>], iteration_bounds = array<i64: 1>, scalar_prefetch = 0 : i64, scratch_operands = 0 : i64, tpu.core_type = #tpu.core_type<tc>, window_params = [{transform_indices = @transform_0, window_bounds = array<i64: 2, 4>}, {pipeline_mode = #tpu.pipeline_mode<synchronous>, transform_indices = @transform_1, window_bounds = array<i64: 4, 128>}, {pipeline_mode = #tpu.pipeline_mode<synchronous>, transform_indices = @transform_2, window_bounds = array<i64: 1, 128>}, {transform_indices = @transform_3, window_bounds = array<i64: 2, 128>}]} {
    %c0 = arith.constant 0 : index
    %c0_0 = arith.constant 0 : index
    %0 = vector.load %arg1[%c0, %c0_0] : memref<2x4xf32, #tpu.memory_space<vmem>>, vector<2x4xf32>
    %c0_1 = arith.constant 0 : index
    %c0_2 = arith.constant 0 : index
    %1 = vector.load %arg2[%c0_1, %c0_2] : memref<4x128xf32, #tpu.memory_space<vmem>>, vector<4x128xf32>
    %cst = arith.constant dense<0.000000e+00> : vector<2x128xf32>
    %2 = tpu.matmul %0, %1, %cst {dimension_numbers = #tpu.dot_dimension_numbers<[1], [0], [0], [1], [0, 0, 1, 1], [], []>} : vector<2x4xf32>, vector<4x128xf32>, vector<2x128xf32> -> vector<2x128xf32>
    %c0_3 = arith.constant 0 : index
    %c0_4 = arith.constant 0 : index
    %3 = vector.load %arg3[%c0_3, %c0_4] : memref<1x128xf32, #tpu.memory_space<vmem>>, vector<1x128xf32>
    %4 = vector.broadcast %3 : vector<1x128xf32> to vector<2x128xf32>
    %5 = arith.addf %2, %4 : vector<2x128xf32>
    %c0_5 = arith.constant 0 : index
    %c0_6 = arith.constant 0 : index
    %6 = vector.load %arg4[%c0_5, %c0_6] : memref<2x128xf32, #tpu.memory_space<vmem>>, vector<2x128xf32>
    tpu.vector_store %arg4[%c0_5, %c0_6], %5 {strides = array<i32>} : memref<2x128xf32, #tpu.memory_space<vmem>>, vector<2x128xf32>,
    return
  }
  func.func @transform_0(%arg0: i32) -> (i32, i32) {
    %c0_i32 = arith.constant 0 : i32
    %c0_i32_0 = arith.constant 0 : i32
    return %arg0, %c0_i32 : i32, i32
  }
  func.func @transform_1(%arg0: i32) -> (i32, i32) {
    %c0_i32 = arith.constant 0 : i32
    %c0_i32_0 = arith.constant 0 : i32
    %c0_i32_1 = arith.constant 0 : i32
    return %c0_i32, %c0_i32_0 : i32, i32
  }
  func.func @transform_2(%arg0: i32) -> (i32, i32) {
    %c0_i32 = arith.constant 0 : i32
    %c0_i32_0 = arith.constant 0 : i32
    %c0_i32_1 = arith.constant 0 : i32
    return %c0_i32, %c0_i32_0 : i32, i32
  }
  func.func @transform_3(%arg0: i32) -> (i32, i32) {
    %c0_i32 = arith.constant 0 : i32
    %c0_i32_0 = arith.constant 0 : i32
    return %arg0, %c0_i32 : i32, i32
  }
}

</mosaic_0001>

<llo_original>
// kernel: tpu_custom_call.1
$region0: #{tpu_custom_call.1}
  #allocation0 [shape = 'u32[]', space=smem, size = 0x4, offset = 0x4, fixed_abs, tag = 'smem constant byte address 0x4 - core index']
  #allocation1 [shape = 'u32[144,128]{1,0:T(1,128)}', space=vmem, size = 0x12000, scoped, tag = 'internal scratch']
  %s0 = inlined_call_operand.hbm [shape: f32[2,4], index: 0, kind: input, shape index: {}]
  %s1 = inlined_call_operand.hbm [shape: f32[4,128], index: 1, kind: input, shape index: {}]
  %s2 = inlined_call_operand.vmem [shape: f32[1,128], index: 2, kind: input, shape index: {}]
  %s3 = inlined_call_operand.hbm [shape: f32[2,128], index: 3, kind: output, shape index: {}]
  %s4 = sld [smem:[#allocation0]]
  $region30: #{tpu_custom_call.1} parent=0
    _
  %s6 = ssub.s32 1, %s4
  %s7 = scalar_select 0, %s6, %s4
  $region1: #{tpu_custom_call.1} parent=0
    #allocation2 [shape = 'u8[1024]{0}', space=vmem, size = 0x400, scoped, tag = 'input window, operand 0, single buffered']
    #allocation3 [shape = 's32[1]{0}', space=sflag, size = 0x4, scoped, tag = 'scoped memory for tpu_custom_call.1']
    #allocation4 [shape = 's32[1]{0}', space=sflag, size = 0x4, scoped, tag = 'scoped memory for tpu_custom_call.1']
    #allocation5 [shape = 'u8[2048]{0}', space=vmem, size = 0x800, scoped, tag = 'input window, operand 1, single buffered']
    #allocation6 [shape = 's32[1]{0}', space=sflag, size = 0x4, scoped, tag = 'scoped memory for tpu_custom_call.1']
    #allocation7 [shape = 'u8[1024]{0}', space=vmem, size = 0x400, scoped, tag = 'output window, operand 0, single buffered']
    %8 = vsyncpa [#allocation3], 0
    %9 = vsyncpa [#allocation6], 0
    %10 = vsyncpa [#allocation4], 0
    // Predicated region
    $region2: #{tpu_custom_call.1} parent=1 // pred_check
      _
    $region3: #{tpu_custom_call.1} parent=1 // pred_check_branch
      %12 = sbr.rel (0) target = $region5
    $region4: #{tpu_custom_call.1} parent=1 // pred_region
      %s14 = ssub.s32 32, 32
      %15 = vsyncadd [#allocation3], %s14
      %s17 = sshll.u32 [#allocation2], 4
      %s18 = int_to_ptr.vmem [resolvable:$true] %s17
      %20 = dma.hbm_to_vmem [thread:$0]  %s0, 32, %s18, [#allocation3]
    $region5: #{tpu_custom_call.1} parent=1 // pred_fallthru
      _
    // Predicated region
    $region6: #{tpu_custom_call.1} parent=1 // pred_check
      _
    $region7: #{tpu_custom_call.1} parent=1 // pred_check_branch
      %22 = sbr.rel (0) target = $region9
    $region8: #{tpu_custom_call.1} parent=1 // pred_region
      %s24 = ssub.s32 64, 64
      %25 = vsyncadd [#allocation6], %s24
      %s27 = sshll.u32 [#allocation5], 4
      %s28 = int_to_ptr.vmem [resolvable:$true] %s27
      %30 = dma.hbm_to_vmem [thread:$0]  %s1, 64, %s28, [#allocation6]
    $region9: #{tpu_custom_call.1} parent=1 // pred_fallthru
      _
    // Predicated region
    $region10: #{tpu_custom_call.1} parent=1 // pred_check
      _
    $region11: #{tpu_custom_call.1} parent=1 // pred_check_branch
      %32 = sbr.rel (0) target = $region13
    $region12: #{tpu_custom_call.1} parent=1 // pred_region
      _
    $region13: #{tpu_custom_call.1} parent=1 // pred_fallthru
      _
    // Predicated region
    $region14: #{tpu_custom_call.1} parent=1 // pred_check
      _
    $region15: #{tpu_custom_call.1} parent=1 // pred_check_branch
      %34 = sbr.rel (0) target = $region17
    $region16: #{tpu_custom_call.1} parent=1 // pred_region
      %35 = dma.done [#allocation3], 32
    $region17: #{tpu_custom_call.1} parent=1 // pred_fallthru
      _
    // Predicated region
    $region18: #{tpu_custom_call.1} parent=1 // pred_check
      _
    $region19: #{tpu_custom_call.1} parent=1 // pred_check_branch
      %37 = sbr.rel (0) target = $region21
    $region20: #{tpu_custom_call.1} parent=1 // pred_region
      %38 = dma.done [#allocation6], 64
    $region21: #{tpu_custom_call.1} parent=1 // pred_fallthru
      _
    %v39 = vld [vmem:[#allocation2] sm:$0x3]
    %v40 = vld [vmem:[#allocation5] sm:$0xf]
    %v41 = vld [vmem:[%s2] sm:$0x1]
    %v43 = vlaneseq
    %v44 = vshrl.u32 %v43, 7
    %v45 = vsub.s32 0, %v44
    %v46 = vrot.slane %v41, %v45
    %vm48 = vcmask 31744
    %v50 = vsel %vm48, %v39, 0
    %vm52 = vcmask 1043456
    %v54 = vsel %vm52, %v40, 0
    %56 = vmatprep.subr.mxu0 0.0
    %57 = vmatpush1.msra.mxu0 %v54
    %58 = vmatprep.subr.mxu0 0.0
    %59 = vmatpush1.msra.mxu0 0.0
    %60 = vmatprep.subr.mxu0 0.0
    %61 = vmatpush1.msra.mxu0 0.0
    %62 = vmatprep.subr.mxu0 0.0
    %63 = vmatpush1.msra.mxu0 0.0
    %64 = vmatprep.subr.mxu0 0.0
    %65 = vmatpush1.msra.mxu0 0.0
    %66 = vmatprep.subr.mxu0 0.0
    %67 = vmatpush1.msra.mxu0 0.0
    %68 = vmatprep.subr.mxu0 0.0
    %69 = vmatpush1.msra.mxu0 0.0
    %70 = vmatprep.subr.mxu0 0.0
    %71 = vmatpush1.msra.mxu0 0.0
    %72 = vmatprep.subr.mxu0 0.0
    %73 = vmatpush1.msra.mxu0 0.0
    %74 = vmatprep.subr.mxu0 0.0
    %75 = vmatpush1.msra.mxu0 0.0
    %76 = vmatprep.subr.mxu0 0.0
    %77 = vmatpush1.msra.mxu0 0.0
    %78 = vmatprep.subr.mxu0 0.0
    %79 = vmatpush1.msra.mxu0 0.0
    %80 = vmatprep.subr.mxu0 0.0
    %81 = vmatpush1.msra.mxu0 0.0
    %82 = vmatprep.subr.mxu0 0.0
    %83 = vmatpush1.msra.mxu0 0.0
    %84 = vmatprep.subr.mxu0 0.0
    %85 = vmatpush1.msra.mxu0 0.0
    %86 = vmatprep.subr.mxu0 0.0
    %87 = vmatpush1.msra.mxu0 0.0
    %88 = vmatprep.subr.mxu0 0.0
    %89 = vmatpush1.msra.mxu0 0.0
    %90 = vmatprep.subr.mxu0 0.0
    %91 = vmatpush1.msra.mxu0 0.0
    %92 = vmatprep.subr.mxu0 0.0
    %93 = vmatpush1.msra.mxu0 0.0
    %94 = vmatprep.subr.mxu0 0.0
    %95 = vmatpush1.msra.mxu0 0.0
    %96 = vmatprep.subr.mxu0 0.0
    %97 = vmatpush1.msra.mxu0 0.0
    %98 = vmatprep.subr.mxu0 0.0
    %99 = vmatpush1.msra.mxu0 0.0
    %100 = vmatprep.subr.mxu0 0.0
    %101 = vmatpush1.msra.mxu0 0.0
    %102 = vmatprep.subr.mxu0 0.0
    %103 = vmatpush1.msra.mxu0 0.0
    %104 = vmatprep.subr.mxu0 0.0
    %105 = vmatpush1.msra.mxu0 0.0
    %106 = vmatprep.subr.mxu0 0.0
    %107 = vmatpush1.msra.mxu0 0.0
    %108 = vmatprep.subr.mxu0 0.0
    %109 = vmatpush1.msra.mxu0 0.0
    %110 = vmatprep.subr.mxu0 0.0
    %111 = vmatpush1.msra.mxu0 0.0
    %112 = vmatprep.subr.mxu0 0.0
    %113 = vmatpush1.msra.mxu0 0.0
    %114 = vmatprep.subr.mxu0 0.0
    %115 = vmatpush1.msra.mxu0 0.0
    %116 = vmatprep.subr.mxu0 0.0
    %117 = vmatpush1.msra.mxu0 0.0
    %118 = vmatprep.subr.mxu0 0.0
    %119 = vmatpush1.msra.mxu0 0.0
    %120 = vmatprep.mubr.f32.mxu0 0.0
    %121 = vmatmul.mubr.f32.gmra.mrb[0].mxu0 %v50
    %v122 = vpop.f32.mrb[0].mxu0
    %v123 = vadd.f32 %v46, %v122
    %v124 = vpop.f32.mrb[0].mxu0
    %125 = vdwg.mxu0
    %126 = vst [vmem:[#allocation7] sm:$0x3] %v123
    // Predicated region
    $region22: #{tpu_custom_call.1} parent=1 // pred_check
      _
    $region23: #{tpu_custom_call.1} parent=1 // pred_check_branch
      %128 = sbr.rel (0) target = $region25
    $region24: #{tpu_custom_call.1} parent=1 // pred_region
      %s130 = ssub.s32 32, 32
      %131 = vsyncadd [#allocation4], %s130
      %s133 = sshll.u32 [#allocation7], 4
      %s134 = int_to_ptr.vmem [resolvable:$true] %s133
      %136 = dma.vmem_to_hbm [thread:$0]  %s134, 32, %s3, [#allocation4]
    $region25: #{tpu_custom_call.1} parent=1 // pred_fallthru
      _
    // Predicated region
    $region26: #{tpu_custom_call.1} parent=1 // pred_check
      _
    $region27: #{tpu_custom_call.1} parent=1 // pred_check_branch
      %138 = sbr.rel (0) target = $region29
    $region28: #{tpu_custom_call.1} parent=1 // pred_region
      %139 = dma.done [#allocation4], 32
    $region29: #{tpu_custom_call.1} parent=1 // pred_fallthru
      _
    %140 = vsyncpa [#allocation3], 1
    %141 = vsyncpa [#allocation6], 1
    %142 = vsyncpa [#allocation4], 1

</llo_original>
